<compile_context>
chip_gen: v7x
topology: tpu7x:2x2x1
jax: 0.10.0
libtpu: 0.0.40
codegen_flags: <defaults>
</compile_context>

<pallas_src>
import jax
import jax.numpy as jnp
from jax import lax
from jax.experimental import pallas as pl
from jax.experimental.pallas import tpu as pltpu

H1 = 32            # fc1/fc2 output width
H2 = 16            # fc3 output width
PACK_W = 128       # lane-dense packed small-params width
OFF_B12 = 0                # (b1 + b2)      -> [0, 32)
OFF_B3 = H1                # b3             -> [32, 48)
OFF_W4 = H1 + H2           # fc4 weight row -> [48, 64)
OFF_B4 = H1 + 2 * H2       # b4             -> [64, 65)
TB_MAX = 4096      # max batch tile (still << VMEM on every generation)


def critic_kernel(s_ref, a_ref, w1_ref, w2_ref, w3_ref, p_ref, out_ref):
    # Packed small params (always f32).
    b12 = p_ref[:, OFF_B12:OFF_B12 + H1]   # (1, 32)
    b3 = p_ref[:, OFF_B3:OFF_B3 + H2]      # (1, 16)
    w4r = p_ref[:, OFF_W4:OFF_W4 + H2]     # (1, 16)
    b4 = p_ref[:, OFF_B4:OFF_B4 + 1]       # (1, 1)

    # Layer 1: relu(s @ W1 + a @ W2 + (b1+b2)) -- two tiny MXU pushes, f32 acc.
    h = (jnp.dot(s_ref[...], w1_ref[...], preferred_element_type=jnp.float32)
         + jnp.dot(a_ref[...], w2_ref[...], preferred_element_type=jnp.float32)
         + b12)
    h = jnp.maximum(h, 0.0)

    # Layer 2: relu(h @ W3 + b3)
    h1 = jnp.dot(h.astype(w3_ref.dtype), w3_ref[...],
                 preferred_element_type=jnp.float32) + b3
    h1 = jnp.maximum(h1, 0.0)

    # Layer 3 (single output): (1,16) contracted with (TB,16) -> (1, TB).
    # Lane-dense result row -> unmasked stores instead of (TB,1) vst.msk.
    q = lax.dot_general(w4r, h1,
                        dimension_numbers=(((1,), (1,)), ((), ())),
                        preferred_element_type=jnp.float32) + b4
    out_ref[...] = q.astype(out_ref.dtype)


def pack_params(params, compute_dtype=jnp.float32):
    """Pack raw per-layer params (already stored as (in, out)) into the
    kernel's operands. Matmul weights may be cast to bf16; the packed
    bias / fc4-row operand stays f32 (elementwise path)."""
    packed = jnp.zeros((1, PACK_W), jnp.float32)
    packed = packed.at[0, OFF_B12:OFF_B12 + H1].set(
        (params["b1"] + params["b2"])[0])
    packed = packed.at[0, OFF_B3:OFF_B3 + H2].set(params["b3"][0])
    packed = packed.at[0, OFF_W4:OFF_W4 + H2].set(params["w4"][:, 0])
    packed = packed.at[0, OFF_B4].set(params["b4"][0, 0])
    return {
        "w1": params["w1"].astype(compute_dtype),
        "w2": params["w2"].astype(compute_dtype),
        "w3": params["w3"].astype(compute_dtype),
        "packed": packed,
    }


def _round_up(x, m):
    return ((x + m - 1) // m) * m


def _num_tensorcores():
    # Best-effort core count (2 TCs/chip on v7x). Falls back to 1.
    try:
        return max(1, int(getattr(jax.devices()[0], "num_cores", 1)))
    except Exception:
        return 1


def critic_net_forward(s, a, packed_params, *, compute_dtype=jnp.float32,
                       num_cores=None):
    # NOTE: with compute_dtype=bfloat16 the inter-layer activation is
    # truncated to bf16; results drift from a strict f32 reference (expected).
    B = s.shape[0]
    w1 = packed_params["w1"]
    w2 = packed_params["w2"]
    w3 = packed_params["w3"]
    packed = packed_params["packed"]
    sd = w1.shape[0]
    ad = w2.shape[0]

    if num_cores is None:
        num_cores = _num_tensorcores()

    # Batch tiling: fewest / biggest grid steps (grid is a serial loop on one
    # TC); on multi-TC chips split the batch so every core gets a step.
    TB = min(TB_MAX, _round_up(max(pl.cdiv(B, num_cores), 8), 8))
    B_pad = _round_up(B, TB)
    num_tiles = B_pad // TB
    if num_tiles > 1 and TB % 128 != 0:
        # Lane-dense (1, TB) output block needs TB % 128 == 0 unless the grid
        # collapses to a single step (then the block spans the full array).
        TB = _round_up(TB, 128)
        B_pad = _round_up(B, TB)
        num_tiles = B_pad // TB

    s_p = s.astype(compute_dtype)
    a_p = a.astype(compute_dtype)
    if B_pad != B:
        s_p = jnp.pad(s_p, ((0, B_pad - B), (0, 0)))
        a_p = jnp.pad(a_p, ((0, B_pad - B), (0, 0)))

    # Deepen the activation input pipeline only when the grid is long enough.
    act_kwargs = dict(pipeline_mode=pl.Buffered(3)) if num_tiles >= 3 else {}

    bytes_per = jnp.dtype(compute_dtype).itemsize
    cost = pl.CostEstimate(
        flops=2 * B_pad * (sd * H1 + ad * H1 + H1 * H2 + H2),
        transcendentals=0,
        bytes_accessed=(B_pad * (sd + ad) * bytes_per   # activations in
                        + (sd + ad) * H1 * bytes_per    # w1, w2
                        + H1 * H2 * bytes_per           # w3
                        + PACK_W * 4                    # packed small params
                        + B_pad * 4),                   # output row
    )

    out = pl.pallas_call(
        critic_kernel,
        out_shape=jax.ShapeDtypeStruct((1, B_pad), jnp.float32),
        grid=(num_tiles,),
        in_specs=[
            # Activations stream over the batch grid.
            pl.BlockSpec((TB, sd), lambda i: (i, 0), **act_kwargs),
            pl.BlockSpec((TB, ad), lambda i: (i, 0), **act_kwargs),
            # Weights / packed small params stay resident in VMEM.
            pl.BlockSpec((sd, H1), lambda i: (0, 0)),
            pl.BlockSpec((ad, H1), lambda i: (0, 0)),
            pl.BlockSpec((H1, H2), lambda i: (0, 0)),
            pl.BlockSpec((1, PACK_W), lambda i: (0, 0)),
        ],
        # Lane-dense output: each grid step writes one dense (1, TB) slab.
        out_specs=pl.BlockSpec((1, TB), lambda i: (0, i)),
        compiler_params=pltpu.CompilerParams(
            dimension_semantics=("parallel",)),
        cost_estimate=cost,
    )(s_p, a_p, w1, w2, w3, packed)

    return out[0, :B].reshape(B, 1)


def init_params(key, state_dim, action_dim):
    """Deterministic init mirroring the PyTorch module:
       weight ~ N(0, 0.1), bias ~ N(0.1, 1.0).  Weights stored as (in, out)."""
    ks = jax.random.split(key, 8)

    def w(k, in_f, out_f):
        return (0.1 * jax.random.normal(k, (out_f, in_f), jnp.float32)).T

    def b(k, out_f):
        return (0.1 + jax.random.normal(k, (out_f,), jnp.float32)).reshape(1, out_f)

    return {
        "w1": w(ks[0], state_dim, H1), "b1": b(ks[1], H1),
        "w2": w(ks[2], action_dim, H1), "b2": b(ks[3], H1),
        "w3": w(ks[4], H1, H2),         "b3": b(ks[5], H2),
        "w4": w(ks[6], H2, 1),          "b4": b(ks[7], 1),
    }


if __name__ == "__main__":
    B, STATE_DIM, ACTION_DIM = 2, 8, 4

    key = jax.random.PRNGKey(0)
    k_s, k_a, k_p = jax.random.split(key, 3)

    s = jax.random.normal(k_s, (B, STATE_DIM), jnp.float32)
    a = jax.random.normal(k_a, (B, ACTION_DIM), jnp.float32)
    params = init_params(k_p, STATE_DIM, ACTION_DIM)

    # f32 compute keeps the tight numerical check; pass compute_dtype=jnp.bfloat16
    # on v6e/v7x training batches to halve activation/weight DMA bytes.
    packed = pack_params(params, compute_dtype=jnp.float32)
    out = critic_net_forward(s, a, packed, compute_dtype=jnp.float32)
    out = jax.block_until_ready(out)

    # Pure-JAX reference of the original per-layer math.
    ref = jnp.maximum(s @ params["w1"] + params["b1"]
                      + a @ params["w2"] + params["b2"], 0.0)
    ref = jnp.maximum(ref @ params["w3"] + params["b3"], 0.0)
    ref = ref @ params["w4"] + params["b4"]

    assert out.shape == (B, 1)
    assert jnp.allclose(out, ref, atol=1e-5, rtol=1e-5)

    print("KERNEL_OK")
</pallas_src>

<mosaic_0001>
module attributes {stable_mosaic.version = 11 : i64} {
  func.func @critic_kernel(%arg0: i32, %arg1: memref<8x8xf32, #tpu.memory_space<vmem>>, %arg2: memref<8x4xf32, #tpu.memory_space<vmem>>, %arg3: memref<8x32xf32, #tpu.memory_space<vmem>>, %arg4: memref<4x32xf32, #tpu.memory_space<vmem>>, %arg5: memref<32x16xf32, #tpu.memory_space<vmem>>, %arg6: memref<1x128xf32, #tpu.memory_space<vmem>>, %arg7: memref<1x8xf32, #tpu.memory_space<vmem>>) attributes {dimension_semantics = [#tpu.dimension_semantics<parallel>], iteration_bounds = array<i64: 1>, scalar_prefetch = 0 : i64, scratch_operands = 0 : i64, tpu.core_type = #tpu.core_type<tc>, window_params = [{transform_indices = @transform_0, window_bounds = array<i64: 8, 8>}, {transform_indices = @transform_1, window_bounds = array<i64: 8, 4>}, {pipeline_mode = #tpu.pipeline_mode<synchronous>, transform_indices = @transform_2, window_bounds = array<i64: 8, 32>}, {pipeline_mode = #tpu.pipeline_mode<synchronous>, transform_indices = @transform_3, window_bounds = array<i64: 4, 32>}, {pipeline_mode = #tpu.pipeline_mode<synchronous>, transform_indices = @transform_4, window_bounds = array<i64: 32, 16>}, {pipeline_mode = #tpu.pipeline_mode<synchronous>, transform_indices = @transform_5, window_bounds = array<i64: 1, 128>}, {transform_indices = @transform_6, window_bounds = array<i64: 1, 8>}]} {
    %c0 = arith.constant 0 : index
    %c0_0 = arith.constant 0 : index
    %0 = vector.load %arg6[%c0, %c0_0] : memref<1x128xf32, #tpu.memory_space<vmem>>, vector<1x32xf32>
    %c0_1 = arith.constant 0 : index
    %c32 = arith.constant 32 : index
    %1 = vector.load %arg6[%c0_1, %c32] : memref<1x128xf32, #tpu.memory_space<vmem>>, vector<1x16xf32>
    %c0_2 = arith.constant 0 : index
    %c48 = arith.constant 48 : index
    %2 = vector.load %arg6[%c0_2, %c48] : memref<1x128xf32, #tpu.memory_space<vmem>>, vector<1x16xf32>
    %c0_3 = arith.constant 0 : index
    %c64 = arith.constant 64 : index
    %3 = vector.load %arg6[%c0_3, %c64] : memref<1x128xf32, #tpu.memory_space<vmem>>, vector<1x1xf32>
    %c0_4 = arith.constant 0 : index
    %c0_5 = arith.constant 0 : index
    %4 = vector.load %arg1[%c0_4, %c0_5] : memref<8x8xf32, #tpu.memory_space<vmem>>, vector<8x8xf32>
    %c0_6 = arith.constant 0 : index
    %c0_7 = arith.constant 0 : index
    %5 = vector.load %arg3[%c0_6, %c0_7] : memref<8x32xf32, #tpu.memory_space<vmem>>, vector<8x32xf32>
    %cst = arith.constant dense<0.000000e+00> : vector<8x32xf32>
    %6 = tpu.matmul %4, %5, %cst {dimension_numbers = #tpu.dot_dimension_numbers<[1], [0], [0], [1], [0, 0, 1, 1], [], []>} : vector<8x8xf32>, vector<8x32xf32>, vector<8x32xf32> -> vector<8x32xf32>
    %c0_8 = arith.constant 0 : index
    %c0_9 = arith.constant 0 : index
    %7 = vector.load %arg2[%c0_8, %c0_9] : memref<8x4xf32, #tpu.memory_space<vmem>>, vector<8x4xf32>
    %c0_10 = arith.constant 0 : index
    %c0_11 = arith.constant 0 : index
    %8 = vector.load %arg4[%c0_10, %c0_11] : memref<4x32xf32, #tpu.memory_space<vmem>>, vector<4x32xf32>
    %cst_12 = arith.constant dense<0.000000e+00> : vector<8x32xf32>
    %9 = tpu.matmul %7, %8, %cst_12 {dimension_numbers = #tpu.dot_dimension_numbers<[1], [0], [0], [1], [0, 0, 1, 1], [], []>} : vector<8x4xf32>, vector<4x32xf32>, vector<8x32xf32> -> vector<8x32xf32>
    %10 = arith.addf %6, %9 : vector<8x32xf32>
    %11 = vector.broadcast %0 : vector<1x32xf32> to vector<8x32xf32>
    %12 = arith.addf %10, %11 : vector<8x32xf32>
    %cst_13 = arith.constant 0.000000e+00 : f32
    %13 = vector.broadcast %cst_13 : f32 to vector<8x32xf32>
    %14 = arith.maximumf %12, %13 : vector<8x32xf32>
    %c0_14 = arith.constant 0 : index
    %c0_15 = arith.constant 0 : index
    %15 = vector.load %arg5[%c0_14, %c0_15] : memref<32x16xf32, #tpu.memory_space<vmem>>, vector<32x16xf32>
    %cst_16 = arith.constant dense<0.000000e+00> : vector<8x16xf32>
    %16 = tpu.matmul %14, %15, %cst_16 {dimension_numbers = #tpu.dot_dimension_numbers<[1], [0], [0], [1], [0, 0, 1, 1], [], []>} : vector<8x32xf32>, vector<32x16xf32>, vector<8x16xf32> -> vector<8x16xf32>
    %17 = vector.broadcast %1 : vector<1x16xf32> to vector<8x16xf32>
    %18 = arith.addf %16, %17 : vector<8x16xf32>
    %cst_17 = arith.constant 0.000000e+00 : f32
    %19 = vector.broadcast %cst_17 : f32 to vector<8x16xf32>
    %20 = arith.maximumf %18, %19 : vector<8x16xf32>
    %cst_18 = arith.constant dense<0.000000e+00> : vector<1x8xf32>
    %21 = tpu.matmul %2, %20, %cst_18 {dimension_numbers = #tpu.dot_dimension_numbers<[1], [1], [0], [0], [0, 0, 1, 0], [], []>} : vector<1x16xf32>, vector<8x16xf32>, vector<1x8xf32> -> vector<1x8xf32>
    %22 = vector.broadcast %3 : vector<1x1xf32> to vector<1x8xf32>
    %23 = arith.addf %21, %22 : vector<1x8xf32>
    %c0_19 = arith.constant 0 : index
    %c0_20 = arith.constant 0 : index
    %24 = vector.load %arg7[%c0_19, %c0_20] : memref<1x8xf32, #tpu.memory_space<vmem>>, vector<1x8xf32>
    tpu.vector_store %arg7[%c0_19, %c0_20], %23 {strides = array<i32>} : memref<1x8xf32, #tpu.memory_space<vmem>>, vector<1x8xf32>,
    return
  }
  func.func @transform_0(%arg0: i32) -> (i32, i32) {
    %c0_i32 = arith.constant 0 : i32
    %c0_i32_0 = arith.constant 0 : i32
    return %arg0, %c0_i32 : i32, i32
  }
  func.func @transform_1(%arg0: i32) -> (i32, i32) {
    %c0_i32 = arith.constant 0 : i32
    %c0_i32_0 = arith.constant 0 : i32
    return %arg0, %c0_i32 : i32, i32
  }
  func.func @transform_2(%arg0: i32) -> (i32, i32) {
    %c0_i32 = arith.constant 0 : i32
    %c0_i32_0 = arith.constant 0 : i32
    %c0_i32_1 = arith.constant 0 : i32
    return %c0_i32, %c0_i32_0 : i32, i32
  }
  func.func @transform_3(%arg0: i32) -> (i32, i32) {
    %c0_i32 = arith.constant 0 : i32
    %c0_i32_0 = arith.constant 0 : i32
    %c0_i32_1 = arith.constant 0 : i32
    return %c0_i32, %c0_i32_0 : i32, i32
  }
  func.func @transform_4(%arg0: i32) -> (i32, i32) {
    %c0_i32 = arith.constant 0 : i32
    %c0_i32_0 = arith.constant 0 : i32
    %c0_i32_1 = arith.constant 0 : i32
    return %c0_i32, %c0_i32_0 : i32, i32
  }
  func.func @transform_5(%arg0: i32) -> (i32, i32) {
    %c0_i32 = arith.constant 0 : i32
    %c0_i32_0 = arith.constant 0 : i32
    %c0_i32_1 = arith.constant 0 : i32
    return %c0_i32, %c0_i32_0 : i32, i32
  }
  func.func @transform_6(%arg0: i32) -> (i32, i32) {
    %c0_i32 = arith.constant 0 : i32
    %c0_i32_0 = arith.constant 0 : i32
    return %c0_i32, %arg0 : i32, i32
  }
}

</mosaic_0001>

<llo_original>
// kernel: tpu_custom_call.1
$region0: #{tpu_custom_call.1}
  #allocation0 [shape = 'u32[]', space=smem, size = 0x4, offset = 0x4, fixed_abs, tag = 'smem constant byte address 0x4 - core index']
  #allocation1 [shape = 'u32[144,128]{1,0:T(1,128)}', space=vmem, size = 0x12000, scoped, tag = 'internal scratch']
  %s0 = inlined_call_operand.vmem [shape: f32[8,8], index: 0, kind: input, shape index: {}]
  %s1 = inlined_call_operand.vmem [shape: f32[8,4], index: 1, kind: input, shape index: {}]
  %s2 = inlined_call_operand.vmem [shape: f32[8,32], index: 2, kind: input, shape index: {}]
  %s3 = inlined_call_operand.vmem [shape: f32[4,32], index: 3, kind: input, shape index: {}]
  %s4 = inlined_call_operand.vmem [shape: f32[32,16], index: 4, kind: input, shape index: {}]
  %s5 = inlined_call_operand.vmem [shape: f32[1,128], index: 5, kind: input, shape index: {}]
  %s6 = inlined_call_operand.hbm [shape: f32[1,8], index: 6, kind: output, shape index: {}]
  %s7 = sld [smem:[#allocation0]]
  $region34: #{tpu_custom_call.1} parent=0
    _
  %s9 = ssub.s32 1, %s7
  %s10 = scalar_select 0, %s9, %s7
  $region1: #{tpu_custom_call.1} parent=0
    #allocation2 [shape = 'u8[512]{0}', space=vmem, size = 0x400, scoped, tag = 'output window, operand 0, single buffered']
    #allocation3 [shape = 's32[1]{0}', space=sflag, size = 0x4, scoped, tag = 'scoped memory for tpu_custom_call.1']
    %11 = vsyncpa [#allocation3], 0
    // Predicated region
    $region2: #{tpu_custom_call.1} parent=1 // pred_check
      _
    $region3: #{tpu_custom_call.1} parent=1 // pred_check_branch
      %13 = sbr.rel (0) target = $region5
    $region4: #{tpu_custom_call.1} parent=1 // pred_region
      _
    $region5: #{tpu_custom_call.1} parent=1 // pred_fallthru
      _
    // Predicated region
    $region6: #{tpu_custom_call.1} parent=1 // pred_check
      _
    $region7: #{tpu_custom_call.1} parent=1 // pred_check_branch
      %15 = sbr.rel (0) target = $region9
    $region8: #{tpu_custom_call.1} parent=1 // pred_region
      _
    $region9: #{tpu_custom_call.1} parent=1 // pred_fallthru
      _
    // Predicated region
    $region10: #{tpu_custom_call.1} parent=1 // pred_check
      _
    $region11: #{tpu_custom_call.1} parent=1 // pred_check_branch
      %17 = sbr.rel (0) target = $region13
    $region12: #{tpu_custom_call.1} parent=1 // pred_region
      _
    $region13: #{tpu_custom_call.1} parent=1 // pred_fallthru
      _
    // Predicated region
    $region14: #{tpu_custom_call.1} parent=1 // pred_check
      _
    $region15: #{tpu_custom_call.1} parent=1 // pred_check_branch
      %19 = sbr.rel (0) target = $region17
    $region16: #{tpu_custom_call.1} parent=1 // pred_region
      _
    $region17: #{tpu_custom_call.1} parent=1 // pred_fallthru
      _
    // Predicated region
    $region18: #{tpu_custom_call.1} parent=1 // pred_check
      _
    $region19: #{tpu_custom_call.1} parent=1 // pred_check_branch
      %21 = sbr.rel (0) target = $region21
    $region20: #{tpu_custom_call.1} parent=1 // pred_region
      _
    $region21: #{tpu_custom_call.1} parent=1 // pred_fallthru
      _
    // Predicated region
    $region22: #{tpu_custom_call.1} parent=1 // pred_check
      _
    $region23: #{tpu_custom_call.1} parent=1 // pred_check_branch
      %23 = sbr.rel (0) target = $region25
    $region24: #{tpu_custom_call.1} parent=1 // pred_region
      _
    $region25: #{tpu_custom_call.1} parent=1 // pred_fallthru
      _
    %v24 = vld [vmem:[%s5] sm:$0x1]
    %v25 = vld [vmem:[%s0] sm:$0xff]
    %v26 = vld [vmem:[%s2] sm:$0xff]
    %v27 = vld [vmem:[%s1] sm:$0xff]
    %v28 = vld [vmem:[%s3] sm:$0xf]
    %vm29 = vcmask 31744
    %v31 = vsel %vm29, %v27, 0
    %vm33 = vcmask 1043456
    %v35 = vsel %vm33, %v28, 0
    %37 = vmatprep.subr.mxu0 0.0
    %38 = vmatpush1.msra.mxu0 %v35
    %39 = vmatprep.subr.mxu0 0.0
    %40 = vmatpush1.msra.mxu0 0.0
    %41 = vmatprep.subr.mxu0 0.0
    %42 = vmatpush1.msra.mxu0 0.0
    %43 = vmatprep.subr.mxu0 0.0
    %44 = vmatpush1.msra.mxu0 0.0
    %45 = vmatprep.subr.mxu0 0.0
    %46 = vmatpush1.msra.mxu0 0.0
    %47 = vmatprep.subr.mxu0 0.0
    %48 = vmatpush1.msra.mxu0 0.0
    %49 = vmatprep.subr.mxu0 0.0
    %50 = vmatpush1.msra.mxu0 0.0
    %51 = vmatprep.subr.mxu0 0.0
    %52 = vmatpush1.msra.mxu0 0.0
    %53 = vmatprep.subr.mxu0 0.0
    %54 = vmatpush1.msra.mxu0 0.0
    %55 = vmatprep.subr.mxu0 0.0
    %56 = vmatpush1.msra.mxu0 0.0
    %57 = vmatprep.subr.mxu0 0.0
    %58 = vmatpush1.msra.mxu0 0.0
    %59 = vmatprep.subr.mxu0 0.0
    %60 = vmatpush1.msra.mxu0 0.0
    %61 = vmatprep.subr.mxu0 0.0
    %62 = vmatpush1.msra.mxu0 0.0
    %63 = vmatprep.subr.mxu0 0.0
    %64 = vmatpush1.msra.mxu0 0.0
    %65 = vmatprep.subr.mxu0 0.0
    %66 = vmatpush1.msra.mxu0 0.0
    %67 = vmatprep.subr.mxu0 0.0
    %68 = vmatpush1.msra.mxu0 0.0
    %69 = vmatprep.subr.mxu0 0.0
    %70 = vmatpush1.msra.mxu0 0.0
    %71 = vmatprep.subr.mxu0 0.0
    %72 = vmatpush1.msra.mxu0 0.0
    %73 = vmatprep.subr.mxu0 0.0
    %74 = vmatpush1.msra.mxu0 0.0
    %75 = vmatprep.subr.mxu0 0.0
    %76 = vmatpush1.msra.mxu0 0.0
    %77 = vmatprep.subr.mxu0 0.0
    %78 = vmatpush1.msra.mxu0 0.0
    %79 = vmatprep.subr.mxu0 0.0
    %80 = vmatpush1.msra.mxu0 0.0
    %81 = vmatprep.subr.mxu0 0.0
    %82 = vmatpush1.msra.mxu0 0.0
    %83 = vmatprep.subr.mxu0 0.0
    %84 = vmatpush1.msra.mxu0 0.0
    %85 = vmatprep.subr.mxu0 0.0
    %86 = vmatpush1.msra.mxu0 0.0
    %87 = vmatprep.subr.mxu0 0.0
    %88 = vmatpush1.msra.mxu0 0.0
    %89 = vmatprep.subr.mxu0 0.0
    %90 = vmatpush1.msra.mxu0 0.0
    %91 = vmatprep.subr.mxu0 0.0
    %92 = vmatpush1.msra.mxu0 0.0
    %93 = vmatprep.subr.mxu0 0.0
    %94 = vmatpush1.msra.mxu0 0.0
    %95 = vmatprep.subr.mxu0 0.0
    %96 = vmatpush1.msra.mxu0 0.0
    %97 = vmatprep.subr.mxu0 0.0
    %98 = vmatpush1.msra.mxu0 0.0
    %99 = vmatprep.subr.mxu0 0.0
    %100 = vmatpush1.msra.mxu0 0.0
    %101 = vmatprep.mubr.f32.mxu0 0.0
    %102 = vmatmul.mubr.f32.gmra.mrb[0].mxu0 %v31
    %v103 = vpop.f32.mrb[0].mxu0
    %v104 = vadd.f32 0.0, %v103
    %v105 = vpop.f32.mrb[0].mxu0
    %106 = vdwg.mxu0
    %vm107 = vcmask 64512
    %v109 = vsel %vm107, %v25, 0
    %111 = vmatprep.subr.mxu0 0.0
    %112 = vmatpush1.msra.mxu0 %v26
    %113 = vmatprep.subr.mxu0 0.0
    %114 = vmatpush1.msra.mxu0 0.0
    %115 = vmatprep.subr.mxu0 0.0
    %116 = vmatpush1.msra.mxu0 0.0
    %117 = vmatprep.subr.mxu0 0.0
    %118 = vmatpush1.msra.mxu0 0.0
    %119 = vmatprep.subr.mxu0 0.0
    %120 = vmatpush1.msra.mxu0 0.0
    %121 = vmatprep.subr.mxu0 0.0
    %122 = vmatpush1.msra.mxu0 0.0
    %123 = vmatprep.subr.mxu0 0.0
    %124 = vmatpush1.msra.mxu0 0.0
    %125 = vmatprep.subr.mxu0 0.0
    %126 = vmatpush1.msra.mxu0 0.0
    %127 = vmatprep.subr.mxu0 0.0
    %128 = vmatpush1.msra.mxu0 0.0
    %129 = vmatprep.subr.mxu0 0.0
    %130 = vmatpush1.msra.mxu0 0.0
    %131 = vmatprep.subr.mxu0 0.0
    %132 = vmatpush1.msra.mxu0 0.0
    %133 = vmatprep.subr.mxu0 0.0
    %134 = vmatpush1.msra.mxu0 0.0
    %135 = vmatprep.subr.mxu0 0.0
    %136 = vmatpush1.msra.mxu0 0.0
    %137 = vmatprep.subr.mxu0 0.0
    %138 = vmatpush1.msra.mxu0 0.0
    %139 = vmatprep.subr.mxu0 0.0
    %140 = vmatpush1.msra.mxu0 0.0
    %141 = vmatprep.subr.mxu0 0.0
    %142 = vmatpush1.msra.mxu0 0.0
    %143 = vmatprep.subr.mxu0 0.0
    %144 = vmatpush1.msra.mxu0 0.0
    %145 = vmatprep.subr.mxu0 0.0
    %146 = vmatpush1.msra.mxu0 0.0
    %147 = vmatprep.subr.mxu0 0.0
    %148 = vmatpush1.msra.mxu0 0.0
    %149 = vmatprep.subr.mxu0 0.0
    %150 = vmatpush1.msra.mxu0 0.0
    %151 = vmatprep.subr.mxu0 0.0
    %152 = vmatpush1.msra.mxu0 0.0
    %153 = vmatprep.subr.mxu0 0.0
    %154 = vmatpush1.msra.mxu0 0.0
    %155 = vmatprep.subr.mxu0 0.0
    %156 = vmatpush1.msra.mxu0 0.0
    %157 = vmatprep.subr.mxu0 0.0
    %158 = vmatpush1.msra.mxu0 0.0
    %159 = vmatprep.subr.mxu0 0.0
    %160 = vmatpush1.msra.mxu0 0.0
    %161 = vmatprep.subr.mxu0 0.0
    %162 = vmatpush1.msra.mxu0 0.0
    %163 = vmatprep.subr.mxu0 0.0
    %164 = vmatpush1.msra.mxu0 0.0
    %165 = vmatprep.subr.mxu0 0.0
    %166 = vmatpush1.msra.mxu0 0.0
    %167 = vmatprep.subr.mxu0 0.0
    %168 = vmatpush1.msra.mxu0 0.0
    %169 = vmatprep.subr.mxu0 0.0
    %170 = vmatpush1.msra.mxu0 0.0
    %171 = vmatprep.subr.mxu0 0.0
    %172 = vmatpush1.msra.mxu0 0.0
    %173 = vmatprep.subr.mxu0 0.0
    %174 = vmatpush1.msra.mxu0 0.0
    %175 = vmatprep.mubr.f32.mxu0 0.0
    %176 = vmatmul.mubr.f32.gmra.mrb[0].mxu0 %v109
    %v177 = vpop.f32.mrb[0].mxu0
    %v178 = vadd.f32 %v104, %v177
    %v179 = vpop.f32.mrb[0].mxu0
    %180 = vdwg.mxu0
    %v182 = vlaneseq
    %v183 = vshrl.u32 %v182, 7
    %v184 = vsub.s32 0, %v183
    %v185 = vrot.slane %v24, %v184
    %v187 = vadd.f32 %v178, %v185
    %v188 = vmax.f32 %v187, 0.0
    %v189 = vld [vmem:[%s4] sm:$0xff]
    %v190 = vld [vmem:[%s4 + $0x8] sm:$0xff]
    %v191 = vld [vmem:[%s4 + $0x10] sm:$0xff]
    %v192 = vld [vmem:[%s4 + $0x18] sm:$0xff]
    %193 = vrot.lane.b32.xlu0 %v185, 96
    %v194 = vpop.permute.xlu0 %193
    %vm196 = vcmask 261120
    %v198 = vsel %vm196, %v188, 0
    %200 = vmatprep.subr.mxu0 0.0
    %201 = vmatpush1.msra.mxu0 %v189
    %202 = vmatprep.subr.mxu0 0.0
    %203 = vmatpush1.msra.mxu0 %v190
    %204 = vmatprep.subr.mxu0 0.0
    %205 = vmatpush1.msra.mxu0 %v191
    %206 = vmatprep.subr.mxu0 0.0
    %207 = vmatpush1.msra.mxu0 %v192
    %208 = vmatprep.subr.mxu0 0.0
    %209 = vmatpush1.msra.mxu0 0.0
    %210 = vmatprep.subr.mxu0 0.0
    %211 = vmatpush1.msra.mxu0 0.0
    %212 = vmatprep.subr.mxu0 0.0
    %213 = vmatpush1.msra.mxu0 0.0
    %214 = vmatprep.subr.mxu0 0.0
    %215 = vmatpush1.msra.mxu0 0.0
    %216 = vmatprep.subr.mxu0 0.0
    %217 = vmatpush1.msra.mxu0 0.0
    %218 = vmatprep.subr.mxu0 0.0
    %219 = vmatpush1.msra.mxu0 0.0
    %220 = vmatprep.subr.mxu0 0.0
    %221 = vmatpush1.msra.mxu0 0.0
    %222 = vmatprep.subr.mxu0 0.0
    %223 = vmatpush1.msra.mxu0 0.0
    %224 = vmatprep.subr.mxu0 0.0
    %225 = vmatpush1.msra.mxu0 0.0
    %226 = vmatprep.subr.mxu0 0.0
    %227 = vmatpush1.msra.mxu0 0.0
    %228 = vmatprep.subr.mxu0 0.0
    %229 = vmatpush1.msra.mxu0 0.0
    %230 = vmatprep.subr.mxu0 0.0
    %231 = vmatpush1.msra.mxu0 0.0
    %232 = vmatprep.subr.mxu0 0.0
    %233 = vmatpush1.msra.mxu0 0.0
    %234 = vmatprep.subr.mxu0 0.0
    %235 = vmatpush1.msra.mxu0 0.0
    %236 = vmatprep.subr.mxu0 0.0
    %237 = vmatpush1.msra.mxu0 0.0
    %238 = vmatprep.subr.mxu0 0.0
    %239 = vmatpush1.msra.mxu0 0.0
    %240 = vmatprep.subr.mxu0 0.0
    %241 = vmatpush1.msra.mxu0 0.0
    %242 = vmatprep.subr.mxu0 0.0
    %243 = vmatpush1.msra.mxu0 0.0
    %244 = vmatprep.subr.mxu0 0.0
    %245 = vmatpush1.msra.mxu0 0.0
    %246 = vmatprep.subr.mxu0 0.0
    %247 = vmatpush1.msra.mxu0 0.0
    %248 = vmatprep.subr.mxu0 0.0
    %249 = vmatpush1.msra.mxu0 0.0
    %250 = vmatprep.subr.mxu0 0.0
    %251 = vmatpush1.msra.mxu0 0.0
    %252 = vmatprep.subr.mxu0 0.0
    %253 = vmatpush1.msra.mxu0 0.0
    %254 = vmatprep.subr.mxu0 0.0
    %255 = vmatpush1.msra.mxu0 0.0
    %256 = vmatprep.subr.mxu0 0.0
    %257 = vmatpush1.msra.mxu0 0.0
    %258 = vmatprep.subr.mxu0 0.0
    %259 = vmatpush1.msra.mxu0 0.0
    %260 = vmatprep.subr.mxu0 0.0
    %261 = vmatpush1.msra.mxu0 0.0
    %262 = vmatprep.subr.mxu0 0.0
    %263 = vmatpush1.msra.mxu0 0.0
    %264 = vmatprep.mubr.f32.mxu0 0.0
    %265 = vmatmul.mubr.f32.gmra.mrb[0].mxu0 %v198
    %v266 = vpop.f32.mrb[0].mxu0
    %v267 = vadd.f32 %v194, %v266
    %v268 = vpop.f32.mrb[0].mxu0
    %269 = vdwg.mxu0
    %v270 = vmax.f32 %v267, 0.0
    %271 = vset.pattern.permute.xlu0 64
    %272 = vperm.xlu0 %271, %v24
    %v273 = vpop.permute.xlu0 %272
    %v275 = vlaneseq
    %v276 = vshrl.u32 %v275, 7
    %v277 = vsub.s32 0, %v276
    %v278 = vrot.slane %v273, %v277
    %279 = vrot.lane.b32.xlu0 %v185, 80
    %v280 = vpop.permute.xlu0 %279
    %vm281 = vcmask 130048
    %v282 = vsel %vm281, %v280, 0
    %v285 = vsel %vm281, %v270, 0
    %287 = vmatprep.subr.mxu0 0.0
    %288 = vmatpush1.xpose.msra.mxu0 %v285
    %289 = vmatprep.subr.mxu0 0.0
    %290 = vmatpush1.xpose.msra.mxu0 0.0
    %291 = vmatprep.subr.mxu0 0.0
    %292 = vmatpush1.xpose.msra.mxu0 0.0
    %293 = vmatprep.subr.mxu0 0.0
    %294 = vmatpush1.xpose.msra.mxu0 0.0
    %295 = vmatprep.subr.mxu0 0.0
    %296 = vmatpush1.xpose.msra.mxu0 0.0
    %297 = vmatprep.subr.mxu0 0.0
    %298 = vmatpush1.xpose.msra.mxu0 0.0
    %299 = vmatprep.subr.mxu0 0.0
    %300 = vmatpush1.xpose.msra.mxu0 0.0
    %301 = vmatprep.subr.mxu0 0.0
    %302 = vmatpush1.xpose.msra.mxu0 0.0
    %303 = vmatprep.subr.mxu0 0.0
    %304 = vmatpush1.xpose.msra.mxu0 0.0
    %305 = vmatprep.subr.mxu0 0.0
    %306 = vmatpush1.xpose.msra.mxu0 0.0
    %307 = vmatprep.subr.mxu0 0.0
    %308 = vmatpush1.xpose.msra.mxu0 0.0
    %309 = vmatprep.subr.mxu0 0.0
    %310 = vmatpush1.xpose.msra.mxu0 0.0
    %311 = vmatprep.subr.mxu0 0.0
    %312 = vmatpush1.xpose.msra.mxu0 0.0
    %313 = vmatprep.subr.mxu0 0.0
    %314 = vmatpush1.xpose.msra.mxu0 0.0
    %315 = vmatprep.subr.mxu0 0.0
    %316 = vmatpush1.xpose.msra.mxu0 0.0
    %317 = vmatprep.subr.mxu0 0.0
    %318 = vmatpush1.xpose.msra.mxu0 0.0
    %319 = vmatprep.subr.mxu0 0.0
    %320 = vmatpush1.xpose.msra.mxu0 0.0
    %321 = vmatprep.subr.mxu0 0.0
    %322 = vmatpush1.xpose.msra.mxu0 0.0
    %323 = vmatprep.subr.mxu0 0.0
    %324 = vmatpush1.xpose.msra.mxu0 0.0
    %325 = vmatprep.subr.mxu0 0.0
    %326 = vmatpush1.xpose.msra.mxu0 0.0
    %327 = vmatprep.subr.mxu0 0.0
    %328 = vmatpush1.xpose.msra.mxu0 0.0
    %329 = vmatprep.subr.mxu0 0.0
    %330 = vmatpush1.xpose.msra.mxu0 0.0
    %331 = vmatprep.subr.mxu0 0.0
    %332 = vmatpush1.xpose.msra.mxu0 0.0
    %333 = vmatprep.subr.mxu0 0.0
    %334 = vmatpush1.xpose.msra.mxu0 0.0
    %335 = vmatprep.subr.mxu0 0.0
    %336 = vmatpush1.xpose.msra.mxu0 0.0
    %337 = vmatprep.subr.mxu0 0.0
    %338 = vmatpush1.xpose.msra.mxu0 0.0
    %339 = vmatprep.subr.mxu0 0.0
    %340 = vmatpush1.xpose.msra.mxu0 0.0
    %341 = vmatprep.subr.mxu0 0.0
    %342 = vmatpush1.xpose.msra.mxu0 0.0
    %343 = vmatprep.subr.mxu0 0.0
    %344 = vmatpush1.xpose.msra.mxu0 0.0
    %345 = vmatprep.subr.mxu0 0.0
    %346 = vmatpush1.xpose.msra.mxu0 0.0
    %347 = vmatprep.subr.mxu0 0.0
    %348 = vmatpush1.xpose.msra.mxu0 0.0
    %349 = vmatprep.subr.mxu0 0.0
    %350 = vmatpush1.xpose.msra.mxu0 0.0
    %351 = vmatprep.mubr.f32.mxu0 0.0
    %352 = vmatmul.mubr.f32.gmra.mrb[0].mxu0 %v282
    %v353 = vpop.f32.mrb[0].mxu0
    %v354 = vadd.f32 %v278, %v353
    %v355 = vpop.f32.mrb[0].mxu0
    %356 = vdwg.mxu0
    %vm357 = vcmask 57344
    %358 = vst.msk [vmem:[#allocation2] sm:$0x1] %vm357, %v354
    // Predicated region
    $region26: #{tpu_custom_call.1} parent=1 // pred_check
      _
    $region27: #{tpu_custom_call.1} parent=1 // pred_check_branch
      %360 = sbr.rel (0) target = $region29
    $region28: #{tpu_custom_call.1} parent=1 // pred_region
      %s362 = ssub.s32 16, 16
      %363 = vsyncadd [#allocation3], %s362
      %s365 = sshll.u32 [#allocation2], 4
      %s366 = int_to_ptr.vmem [resolvable:$true] %s365
      %368 = dma.vmem_to_hbm [thread:$0]  %s366, 16, %s6, [#allocation3]
    $region29: #{tpu_custom_call.1} parent=1 // pred_fallthru
      _
    // Predicated region
    $region30: #{tpu_custom_call.1} parent=1 // pred_check
      _
    $region31: #{tpu_custom_call.1} parent=1 // pred_check_branch
      %370 = sbr.rel (0) target = $region33
    $region32: #{tpu_custom_call.1} parent=1 // pred_region
      %371 = dma.done [#allocation3], 16
    $region33: #{tpu_custom_call.1} parent=1 // pred_fallthru
      _
    %372 = vsyncpa [#allocation3], 1

</llo_original>
